<compile_context>
chip_gen: v7x
topology: tpu7x:2x2x1
jax: 0.10.0
libtpu: 0.0.40
codegen_flags: <defaults>
</compile_context>

<pallas_src>
import jax
import jax.numpy as jnp
from jax.experimental import pallas as pl
from jax.experimental.pallas import tpu as pltpu


# ----------------------------------------------------------------------------
# Kernel
# ----------------------------------------------------------------------------
def mlp_block_kernel(x_ref, w1_ref, b1_ref, w2_ref, b2_ref, w3_ref, b3_ref,
                     o_ref):
    # Cast the x tile in-kernel so a bf16 weight path runs the bf16 MXU without
    # a wrapper-side cast pass (no-op for f32 weights).
    x = x_ref[...].astype(w1_ref.dtype)

    # Layer 1: Linear + ReLU (dropout with p=0.0 is identity).
    h1 = jnp.dot(x, w1_ref[...], preferred_element_type=jnp.float32)
    h1 = jnp.maximum(h1 + b1_ref[...], 0.0)

    # Layer 2: Linear + ReLU.
    h2 = jnp.dot(h1.astype(w2_ref.dtype), w2_ref[...],
                 preferred_element_type=jnp.float32)
    h2 = jnp.maximum(h2 + b2_ref[...], 0.0)

    # Layer 3: Linear + softmax over the lane-dense 128-wide padded row.
    # Padded columns: zero weights + finfo(f32).min bias -> exp() is exactly 0.
    logits = jnp.dot(h2.astype(w3_ref.dtype), w3_ref[...],
                     preferred_element_type=jnp.float32) + b3_ref[...]
    m = jnp.max(logits, axis=-1, keepdims=True)
    e = jnp.exp(logits - m)
    denom = jnp.sum(e, axis=-1, keepdims=True)
    # Exact division: guarantees rows sum to 1 to f32 precision.
    o_ref[...] = (e / denom).astype(o_ref.dtype)


# ----------------------------------------------------------------------------
# Helpers
# ----------------------------------------------------------------------------
def _round_up(n, m):
    return ((n + m - 1) // m) * m


def _choose_batch_tile(B, cap=1024):
    """Multiple-of-8 row tile: minimal pad waste, >=2 grid steps when B >= 16
    (v7x megacore sharding on the 'parallel' axis), capped so VMEM stays small
    while per-step work amortizes the ~0.35us grid overhead."""
    n_tiles = pl.cdiv(B, cap)
    if B >= 16:
        n_tiles = max(n_tiles, 2)
    tile = _round_up(pl.cdiv(B, n_tiles), 8)
    return min(tile, _round_up(B, 8), cap)


def prepare_params(params, *, compute_dtype=jnp.bfloat16):
    """One-time parameter preparation -- call at init/load time, NOT per step.

    * Pads layer-3 weights/bias to a lane-dense width (multiple of 128): zero
      weight columns + finfo(f32).min bias so padded logits drop out of the
      softmax exactly.
    * Casts weights to the MXU compute dtype (bf16 default; f32 accumulation
      is done in-kernel).  Biases stay f32.
    """
    w3, b3 = params["w3"], params["b3"]
    out_dim = w3.shape[1]
    out_pad = _round_up(max(out_dim, 128), 128)
    neg_big = float(jnp.finfo(jnp.float32).min)   # finite; exp() underflows to 0

    w3p = jnp.pad(w3, ((0, 0), (0, out_pad - out_dim)))
    b3p = jnp.pad(b3.astype(jnp.float32), ((0, 0), (0, out_pad - out_dim)),
                  constant_values=neg_big)

    return {
        "w1": params["w1"].astype(compute_dtype),
        "b1": params["b1"].astype(jnp.float32),
        "w2": params["w2"].astype(compute_dtype),
        "b2": params["b2"].astype(jnp.float32),
        "w3": w3p.astype(compute_dtype),
        "b3": b3p,
        "out_dim": out_dim,        # python int (static) -- used to slice output
    }


# ----------------------------------------------------------------------------
# Forward
# ----------------------------------------------------------------------------
def mlp_block_forward(x, prepared, *, batch_tile=None, out_dtype=jnp.float32):
    """x: (B, feature_dim) float32.  prepared: output of prepare_params()."""
    w1, b1 = prepared["w1"], prepared["b1"]
    w2, b2 = prepared["w2"], prepared["b2"]
    w3, b3 = prepared["w3"], prepared["b3"]
    out_dim = int(prepared["out_dim"])

    B, F = x.shape
    assert w1.shape[0] == F, "feature_dim mismatch"
    out_pad = w3.shape[1]

    if batch_tile is None:
        batch_tile = _choose_batch_tile(B)
    else:
        batch_tile = _round_up(batch_tile, 8)

    Bp = _round_up(B, batch_tile)
    xp = jnp.pad(x, ((0, Bp - B), (0, 0))) if Bp != B else x
    grid = (Bp // batch_tile,)

    def const(a):
        # Constant index_map => block stays VMEM-resident across grid steps.
        return pl.BlockSpec(a.shape, lambda i: (0,) * a.ndim)

    flops = 2 * Bp * (F * 256 + 256 * 128 + 128 * out_pad)
    transcendentals = Bp * out_pad                      # exp row
    bytes_accessed = (
        xp.size * xp.dtype.itemsize
        + sum(a.size * a.dtype.itemsize for a in (w1, b1, w2, b2, w3, b3))
        + Bp * out_pad * jnp.dtype(out_dtype).itemsize)

    out_padded = pl.pallas_call(
        mlp_block_kernel,
        out_shape=jax.ShapeDtypeStruct((Bp, out_pad), out_dtype),
        grid=grid,
        in_specs=[
            pl.BlockSpec((batch_tile, F), lambda i: (i, 0)),
            const(w1), const(b1), const(w2), const(b2), const(w3), const(b3),
        ],
        out_specs=pl.BlockSpec((batch_tile, out_pad), lambda i: (i, 0)),
        compiler_params=pltpu.CompilerParams(
            dimension_semantics=("parallel",)),
        cost_estimate=pl.CostEstimate(
            flops=flops,
            transcendentals=transcendentals,
            bytes_accessed=bytes_accessed),
    )(xp, w1, b1, w2, b2, w3, b3)

    return out_padded[:B, :out_dim]


# ----------------------------------------------------------------------------
# Init + pure-JAX reference
# ----------------------------------------------------------------------------
def init_params(key, feature_dim, output_dim):
    """PyTorch nn.Linear-style init (U[-1/sqrt(in), 1/sqrt(in)]).
    Weights stored as (in_dim, out_dim), i.e. transposed vs. PyTorch (out, in)."""
    dims = [(feature_dim, 256), (256, 128), (128, output_dim)]
    params = {}
    for i, (d_in, d_out) in enumerate(dims, start=1):
        key, kw, kb = jax.random.split(key, 3)
        bound = 1.0 / (d_in ** 0.5)
        params[f"w{i}"] = jax.random.uniform(
            kw, (d_in, d_out), jnp.float32, minval=-bound, maxval=bound)
        params[f"b{i}"] = jax.random.uniform(
            kb, (1, d_out), jnp.float32, minval=-bound, maxval=bound)
    return params


def mlp_block_reference(x, params):
    """Pure-JAX f32 reference for correctness checking."""
    h1 = jnp.maximum(x @ params["w1"] + params["b1"], 0.0)
    h2 = jnp.maximum(h1 @ params["w2"] + params["b2"], 0.0)
    logits = h2 @ params["w3"] + params["b3"]
    return jax.nn.softmax(logits, axis=-1)


# ----------------------------------------------------------------------------
# Test
# ----------------------------------------------------------------------------
if __name__ == "__main__":
    key = jax.random.PRNGKey(0)
    feature_dim = 64
    output_dim = 8

    key, kx1, kx2, kp = jax.random.split(key, 4)
    params = init_params(kp, feature_dim, output_dim)

    # Deployed-size batch (16), exact f32 compute path.
    x_small = jax.random.normal(kx1, (16, feature_dim), jnp.float32)
    ref_small = mlp_block_reference(x_small, params)
    prep_f32 = prepare_params(params, compute_dtype=jnp.float32)
    out_small = jax.block_until_ready(mlp_block_forward(x_small, prep_f32))
    assert out_small.shape == (16, output_dim)
    assert jnp.allclose(out_small, ref_small, atol=2e-3, rtol=2e-3), \
        "f32 mismatch vs reference"
    assert jnp.allclose(jnp.sum(out_small, axis=-1), 1.0, atol=1e-3), \
        "f32 rows do not sum to 1"

    # Unaligned batch (100), default bf16 MXU path with f32 accumulation.
    x_big = jax.random.normal(kx2, (100, feature_dim), jnp.float32)
    ref_big = mlp_block_reference(x_big, params)
    prep_bf16 = prepare_params(params)            # bf16 by default
    out_big = jax.block_until_ready(mlp_block_forward(x_big, prep_bf16))
    assert out_big.shape == (100, output_dim)
    assert jnp.allclose(out_big, ref_big, atol=5e-2, rtol=5e-2), \
        "bf16 mismatch vs reference"
    assert jnp.allclose(jnp.sum(out_big, axis=-1), 1.0, atol=1e-3), \
        "bf16 rows do not sum to 1"

    print("KERNEL_OK")
</pallas_src>

<mosaic_0001>
module attributes {stable_mosaic.version = 11 : i64} {
  func.func @mlp_block_kernel(%arg0: i32, %arg1: memref<8x64xf32, #tpu.memory_space<vmem>>, %arg2: memref<64x256xf32, #tpu.memory_space<vmem>>, %arg3: memref<1x256xf32, #tpu.memory_space<vmem>>, %arg4: memref<256x128xf32, #tpu.memory_space<vmem>>, %arg5: memref<1x128xf32, #tpu.memory_space<vmem>>, %arg6: memref<128x128xf32, #tpu.memory_space<vmem>>, %arg7: memref<1x128xf32, #tpu.memory_space<vmem>>, %arg8: memref<8x128xf32, #tpu.memory_space<vmem>>) attributes {dimension_semantics = [#tpu.dimension_semantics<parallel>], iteration_bounds = array<i64: 2>, scalar_prefetch = 0 : i64, scratch_operands = 0 : i64, tpu.core_type = #tpu.core_type<tc>, window_params = [{transform_indices = @transform_0, window_bounds = array<i64: 8, 64>}, {pipeline_mode = #tpu.pipeline_mode<synchronous>, transform_indices = @transform_1, window_bounds = array<i64: 64, 256>}, {pipeline_mode = #tpu.pipeline_mode<synchronous>, transform_indices = @transform_2, window_bounds = array<i64: 1, 256>}, {pipeline_mode = #tpu.pipeline_mode<synchronous>, transform_indices = @transform_3, window_bounds = array<i64: 256, 128>}, {pipeline_mode = #tpu.pipeline_mode<synchronous>, transform_indices = @transform_4, window_bounds = array<i64: 1, 128>}, {pipeline_mode = #tpu.pipeline_mode<synchronous>, transform_indices = @transform_5, window_bounds = array<i64: 128, 128>}, {pipeline_mode = #tpu.pipeline_mode<synchronous>, transform_indices = @transform_6, window_bounds = array<i64: 1, 128>}, {transform_indices = @transform_7, window_bounds = array<i64: 8, 128>}]} {
    %c0 = arith.constant 0 : index
    %c0_0 = arith.constant 0 : index
    %0 = vector.load %arg1[%c0, %c0_0] : memref<8x64xf32, #tpu.memory_space<vmem>>, vector<8x64xf32>
    %c0_1 = arith.constant 0 : index
    %c0_2 = arith.constant 0 : index
    %1 = vector.load %arg2[%c0_1, %c0_2] : memref<64x256xf32, #tpu.memory_space<vmem>>, vector<64x256xf32>
    %cst = arith.constant dense<0.000000e+00> : vector<8x256xf32>
    %2 = tpu.matmul %0, %1, %cst {dimension_numbers = #tpu.dot_dimension_numbers<[1], [0], [0], [1], [0, 0, 1, 1], [], []>} : vector<8x64xf32>, vector<64x256xf32>, vector<8x256xf32> -> vector<8x256xf32>
    %c0_3 = arith.constant 0 : index
    %c0_4 = arith.constant 0 : index
    %3 = vector.load %arg3[%c0_3, %c0_4] : memref<1x256xf32, #tpu.memory_space<vmem>>, vector<1x256xf32>
    %4 = vector.broadcast %3 : vector<1x256xf32> to vector<8x256xf32>
    %5 = arith.addf %2, %4 : vector<8x256xf32>
    %cst_5 = arith.constant 0.000000e+00 : f32
    %6 = vector.broadcast %cst_5 : f32 to vector<8x256xf32>
    %7 = arith.maximumf %5, %6 : vector<8x256xf32>
    %c0_6 = arith.constant 0 : index
    %c0_7 = arith.constant 0 : index
    %8 = vector.load %arg4[%c0_6, %c0_7] : memref<256x128xf32, #tpu.memory_space<vmem>>, vector<256x128xf32>
    %cst_8 = arith.constant dense<0.000000e+00> : vector<8x128xf32>
    %9 = tpu.matmul %7, %8, %cst_8 {dimension_numbers = #tpu.dot_dimension_numbers<[1], [0], [0], [1], [0, 0, 1, 1], [], []>} : vector<8x256xf32>, vector<256x128xf32>, vector<8x128xf32> -> vector<8x128xf32>
    %c0_9 = arith.constant 0 : index
    %c0_10 = arith.constant 0 : index
    %10 = vector.load %arg5[%c0_9, %c0_10] : memref<1x128xf32, #tpu.memory_space<vmem>>, vector<1x128xf32>
    %11 = vector.broadcast %10 : vector<1x128xf32> to vector<8x128xf32>
    %12 = arith.addf %9, %11 : vector<8x128xf32>
    %cst_11 = arith.constant 0.000000e+00 : f32
    %13 = vector.broadcast %cst_11 : f32 to vector<8x128xf32>
    %14 = arith.maximumf %12, %13 : vector<8x128xf32>
    %c0_12 = arith.constant 0 : index
    %c0_13 = arith.constant 0 : index
    %15 = vector.load %arg6[%c0_12, %c0_13] : memref<128x128xf32, #tpu.memory_space<vmem>>, vector<128x128xf32>
    %cst_14 = arith.constant dense<0.000000e+00> : vector<8x128xf32>
    %16 = tpu.matmul %14, %15, %cst_14 {dimension_numbers = #tpu.dot_dimension_numbers<[1], [0], [0], [1], [0, 0, 1, 1], [], []>} : vector<8x128xf32>, vector<128x128xf32>, vector<8x128xf32> -> vector<8x128xf32>
    %c0_15 = arith.constant 0 : index
    %c0_16 = arith.constant 0 : index
    %17 = vector.load %arg7[%c0_15, %c0_16] : memref<1x128xf32, #tpu.memory_space<vmem>>, vector<1x128xf32>
    %18 = vector.broadcast %17 : vector<1x128xf32> to vector<8x128xf32>
    %19 = arith.addf %16, %18 : vector<8x128xf32>
    %cst_17 = arith.constant dense<0xFF800000> : vector<8xf32>
    %20 = vector.multi_reduction <maximumf>, %19, %cst_17 [1] : vector<8x128xf32> to vector<8xf32>
    %21 = vector.shape_cast %20 : vector<8xf32> to vector<8x1xf32>
    %22 = vector.broadcast %21 : vector<8x1xf32> to vector<8x128xf32>
    %23 = arith.subf %19, %22 : vector<8x128xf32>
    %24 = math.exp %23 : vector<8x128xf32>
    %cst_18 = arith.constant dense<0.000000e+00> : vector<8xf32>
    %25 = vector.multi_reduction <add>, %24, %cst_18 [1] : vector<8x128xf32> to vector<8xf32>
    %26 = vector.shape_cast %25 : vector<8xf32> to vector<8x1xf32>
    %27 = vector.broadcast %26 : vector<8x1xf32> to vector<8x128xf32>
    %28 = arith.divf %24, %27 : vector<8x128xf32>
    %c0_19 = arith.constant 0 : index
    %c0_20 = arith.constant 0 : index
    %29 = vector.load %arg8[%c0_19, %c0_20] : memref<8x128xf32, #tpu.memory_space<vmem>>, vector<8x128xf32>
    tpu.vector_store %arg8[%c0_19, %c0_20], %28 {strides = array<i32>} : memref<8x128xf32, #tpu.memory_space<vmem>>, vector<8x128xf32>,
    return
  }
  func.func @transform_0(%arg0: i32) -> (i32, i32) {
    %c0_i32 = arith.constant 0 : i32
    %c0_i32_0 = arith.constant 0 : i32
    return %arg0, %c0_i32 : i32, i32
  }
  func.func @transform_1(%arg0: i32) -> (i32, i32) {
    %c0_i32 = arith.constant 0 : i32
    %c0_i32_0 = arith.constant 0 : i32
    %c0_i32_1 = arith.constant 0 : i32
    return %c0_i32, %c0_i32_0 : i32, i32
  }
  func.func @transform_2(%arg0: i32) -> (i32, i32) {
    %c0_i32 = arith.constant 0 : i32
    %c0_i32_0 = arith.constant 0 : i32
    %c0_i32_1 = arith.constant 0 : i32
    return %c0_i32, %c0_i32_0 : i32, i32
  }
  func.func @transform_3(%arg0: i32) -> (i32, i32) {
    %c0_i32 = arith.constant 0 : i32
    %c0_i32_0 = arith.constant 0 : i32
    %c0_i32_1 = arith.constant 0 : i32
    return %c0_i32, %c0_i32_0 : i32, i32
  }
  func.func @transform_4(%arg0: i32) -> (i32, i32) {
    %c0_i32 = arith.constant 0 : i32
    %c0_i32_0 = arith.constant 0 : i32
    %c0_i32_1 = arith.constant 0 : i32
    return %c0_i32, %c0_i32_0 : i32, i32
  }
  func.func @transform_5(%arg0: i32) -> (i32, i32) {
    %c0_i32 = arith.constant 0 : i32
    %c0_i32_0 = arith.constant 0 : i32
    %c0_i32_1 = arith.constant 0 : i32
    return %c0_i32, %c0_i32_0 : i32, i32
  }
  func.func @transform_6(%arg0: i32) -> (i32, i32) {
    %c0_i32 = arith.constant 0 : i32
    %c0_i32_0 = arith.constant 0 : i32
    %c0_i32_1 = arith.constant 0 : i32
    return %c0_i32, %c0_i32_0 : i32, i32
  }
  func.func @transform_7(%arg0: i32) -> (i32, i32) {
    %c0_i32 = arith.constant 0 : i32
    %c0_i32_0 = arith.constant 0 : i32
    return %arg0, %c0_i32 : i32, i32
  }
}

</mosaic_0001>

<llo_original>
// kernel: tpu_custom_call.1
$region0: #{tpu_custom_call.1}
  #allocation0 [shape = 'u32[]', space=smem, size = 0x4, offset = 0x4, fixed_abs, tag = 'smem constant byte address 0x4 - core index']
  #allocation1 [shape = 'u32[144,128]{1,0:T(1,128)}', space=vmem, size = 0x12000, scoped, tag = 'internal scratch']
  %s0 = inlined_call_operand.hbm [shape: f32[16,64], index: 0, kind: input, shape index: {}]
  %s1 = inlined_call_operand.hbm [shape: f32[64,256], index: 1, kind: input, shape index: {}]
  %s2 = inlined_call_operand.vmem [shape: f32[1,256], index: 2, kind: input, shape index: {}]
  %s3 = inlined_call_operand.hbm [shape: f32[256,128], index: 3, kind: input, shape index: {}]
  %s4 = inlined_call_operand.vmem [shape: f32[1,128], index: 4, kind: input, shape index: {}]
  %s5 = inlined_call_operand.hbm [shape: f32[128,128], index: 5, kind: input, shape index: {}]
  %s6 = inlined_call_operand.vmem [shape: f32[1,128], index: 6, kind: input, shape index: {}]
  %s7 = inlined_call_operand.hbm [shape: f32[16,128], index: 7, kind: output, shape index: {}]
  %s8 = sld [smem:[#allocation0]]
  $region77: #{tpu_custom_call.1} parent=0
    _
  %s10 = ssub.s32 1, %s8
  %s11 = scalar_select 0, %s10, %s8
  $region1: #{tpu_custom_call.1} parent=0
    #allocation2 [shape = 'u8[8192]{0}', space=vmem, size = 0x2000, scoped, tag = 'input window, operand 0']
    #allocation3 [shape = 's32[2]{0}', space=sflag, size = 0x8, scoped, tag = 'scoped memory for tpu_custom_call.1']
    #allocation4 [shape = 's32[2]{0}', space=sflag, size = 0x8, scoped, tag = 'scoped memory for tpu_custom_call.1']
    #allocation5 [shape = 'u8[65536]{0}', space=vmem, size = 0x10000, scoped, tag = 'input window, operand 1, single buffered']
    #allocation6 [shape = 's32[1]{0}', space=sflag, size = 0x4, scoped, tag = 'scoped memory for tpu_custom_call.1']
    #allocation7 [shape = 'u8[131072]{0}', space=vmem, size = 0x20000, scoped, tag = 'input window, operand 3, single buffered']
    #allocation8 [shape = 'u8[65536]{0}', space=vmem, size = 0x10000, scoped, tag = 'input window, operand 5, single buffered']
    #allocation9 [shape = 's32[1]{0}', space=sflag, size = 0x4, scoped, tag = 'scoped memory for tpu_custom_call.1']
    #allocation10 [shape = 'u8[8192]{0}', space=vmem, size = 0x2000, scoped, tag = 'output window, operand 0']
    %12 = vsyncpa [#allocation3], 0
    %s13 = scalar_lea.sflag [#allocation3], 1
    %14 = vsyncpa %s13, 0
    %15 = vsyncpa [#allocation6], 0
    %16 = vsyncpa [#allocation9], 0
    %17 = vsyncpa [#allocation4], 0
    %s18 = scalar_lea.sflag [#allocation4], 1
    %19 = vsyncpa %s18, 0
    loop: start=0, step=1, limit=4
    $region2: #{tpu_custom_call.1} parent=1 // loop_pre_header
      _
    $region3: #{tpu_custom_call.1} parent=1 // loop_header
      %s21 = sphi 0, %s25
      %p22 = scmp.ge.s32.totalorder %s21, 4
      %s31 = sphi 0, %s33
      %s34 = sphi 0, %s31
      %s35 = sphi 0, %s34
      %s51 = sphi 0, %s35
      %s55 = sphi 0, %s55
      %s57 = sphi 0, %s55
      %s58 = sphi 0, %s57
      %s72 = sphi 0, %s58
      %s76 = sphi 0, %s76
      %s78 = sphi 0, %s76
      %s79 = sphi 0, %s78
      %s93 = sphi 0, %s79
      %s97 = sphi 0, %s97
      %s99 = sphi 0, %s97
      %s100 = sphi 0, %s99
      %s114 = sphi 0, %s100
      %s118 = sphi 0, %s118
      %s120 = sphi 0, %s118
      %s121 = sphi 0, %s120
      %s135 = sphi 0, %s121
      %s139 = sphi 0, %s139
      %s141 = sphi 0, %s139
      %s142 = sphi 0, %s141
      %s156 = sphi 0, %s142
      %s160 = sphi 0, %s160
      %s162 = sphi 0, %s160
      %s163 = sphi 0, %s162
      %s177 = sphi 0, %s163
      %s183 = sphi 0, %s185
      %s186 = sphi 0, %s183
      %s187 = sphi 0, %s186
      %s203 = sphi 0, %s187
    $region4: #{tpu_custom_call.1} parent=1 // loop_header_branch
      %24 = sbr.rel (%p22) target = $region8
    $region5: #{tpu_custom_call.1} parent=1 // loop_body
      %s26 = ssub.s32 %s21, 1
      %s27 = ssub.s32 %s21, 2
      %s28 = sadd.s32 %s21, 1
      %s29 = ssub.s32 %s21, %s28
      %p30 = scmp.eq.s32.totalorder %s29, 0
      %s32 = sadd.s32 %s31, 1
      %s33 = scalar_select %p30, %s31, %s32
      %p36 = pneg %p30
      %p37 = scmp.eq.s32.totalorder %s21, 1
      %p38 = por %p36, %p37
      %p39 = scmp.ne.s32.totalorder %s31, %s34
      %p40 = scmp.eq.s32.totalorder %s21, 0
      %p41 = por %p39, %p40
      %p42 = scmp.ne.s32.totalorder %s31, %s34
      %p43 = scmp.eq.s32.totalorder %s26, 1
      %p44 = por %p42, %p43
      %p45 = scmp.ne.s32.totalorder %s34, %s35
      %p46 = scmp.eq.s32.totalorder %s26, 0
      %p47 = por %p45, %p46
      %p48 = scmp.ne.s32.totalorder %s34, %s35
      %p49 = scmp.eq.s32.totalorder %s27, 1
      %p50 = por %p48, %p49
      %p52 = scmp.ne.s32.totalorder %s35, %s51
      %p53 = scmp.eq.s32.totalorder %s27, 0
      %p54 = por %p52, %p53
      %s56 = sadd.s32 %s55, 1
      %p59 = scmp.eq.s32.totalorder %s21, 1
      %p60 = scmp.ne.s32.totalorder %s55, %s57
      %p61 = scmp.eq.s32.totalorder %s21, 0
      %p62 = por %p60, %p61
      %p63 = scmp.ne.s32.totalorder %s55, %s57
      %p64 = scmp.eq.s32.totalorder %s26, 1
      %p65 = por %p63, %p64
      %p66 = scmp.ne.s32.totalorder %s57, %s58
      %p67 = scmp.eq.s32.totalorder %s26, 0
      %p68 = por %p66, %p67
      %p69 = scmp.ne.s32.totalorder %s57, %s58
      %p70 = scmp.eq.s32.totalorder %s27, 1
      %p71 = por %p69, %p70
      %p73 = scmp.ne.s32.totalorder %s58, %s72
      %p74 = scmp.eq.s32.totalorder %s27, 0
      %p75 = por %p73, %p74
      %s77 = sadd.s32 %s76, 1
      %p80 = scmp.eq.s32.totalorder %s21, 1
      %p81 = scmp.ne.s32.totalorder %s76, %s78
      %p82 = scmp.eq.s32.totalorder %s21, 0
      %p83 = por %p81, %p82
      %p84 = scmp.ne.s32.totalorder %s76, %s78
      %p85 = scmp.eq.s32.totalorder %s26, 1
      %p86 = por %p84, %p85
      %p87 = scmp.ne.s32.totalorder %s78, %s79
      %p88 = scmp.eq.s32.totalorder %s26, 0
      %p89 = por %p87, %p88
      %p90 = scmp.ne.s32.totalorder %s78, %s79
      %p91 = scmp.eq.s32.totalorder %s27, 1
      %p92 = por %p90, %p91
      %p94 = scmp.ne.s32.totalorder %s79, %s93
      %p95 = scmp.eq.s32.totalorder %s27, 0
      %p96 = por %p94, %p95
      %s98 = sadd.s32 %s97, 1
      %p101 = scmp.eq.s32.totalorder %s21, 1
      %p102 = scmp.ne.s32.totalorder %s97, %s99
      %p103 = scmp.eq.s32.totalorder %s21, 0
      %p104 = por %p102, %p103
      %p105 = scmp.ne.s32.totalorder %s97, %s99
      %p106 = scmp.eq.s32.totalorder %s26, 1
      %p107 = por %p105, %p106
      %p108 = scmp.ne.s32.totalorder %s99, %s100
      %p109 = scmp.eq.s32.totalorder %s26, 0
      %p110 = por %p108, %p109
      %p111 = scmp.ne.s32.totalorder %s99, %s100
      %p112 = scmp.eq.s32.totalorder %s27, 1
      %p113 = por %p111, %p112
      %p115 = scmp.ne.s32.totalorder %s100, %s114
      %p116 = scmp.eq.s32.totalorder %s27, 0
      %p117 = por %p115, %p116
      %s119 = sadd.s32 %s118, 1
      %p122 = scmp.eq.s32.totalorder %s21, 1
      %p123 = scmp.ne.s32.totalorder %s118, %s120
      %p124 = scmp.eq.s32.totalorder %s21, 0
      %p125 = por %p123, %p124
      %p126 = scmp.ne.s32.totalorder %s118, %s120
      %p127 = scmp.eq.s32.totalorder %s26, 1
      %p128 = por %p126, %p127
      %p129 = scmp.ne.s32.totalorder %s120, %s121
      %p130 = scmp.eq.s32.totalorder %s26, 0
      %p131 = por %p129, %p130
      %p132 = scmp.ne.s32.totalorder %s120, %s121
      %p133 = scmp.eq.s32.totalorder %s27, 1
      %p134 = por %p132, %p133
      %p136 = scmp.ne.s32.totalorder %s121, %s135
      %p137 = scmp.eq.s32.totalorder %s27, 0
      %p138 = por %p136, %p137
      %s140 = sadd.s32 %s139, 1
      %p143 = scmp.eq.s32.totalorder %s21, 1
      %p144 = scmp.ne.s32.totalorder %s139, %s141
      %p145 = scmp.eq.s32.totalorder %s21, 0
      %p146 = por %p144, %p145
      %p147 = scmp.ne.s32.totalorder %s139, %s141
      %p148 = scmp.eq.s32.totalorder %s26, 1
      %p149 = por %p147, %p148
      %p150 = scmp.ne.s32.totalorder %s141, %s142
      %p151 = scmp.eq.s32.totalorder %s26, 0
      %p152 = por %p150, %p151
      %p153 = scmp.ne.s32.totalorder %s141, %s142
      %p154 = scmp.eq.s32.totalorder %s27, 1
      %p155 = por %p153, %p154
      %p157 = scmp.ne.s32.totalorder %s142, %s156
      %p158 = scmp.eq.s32.totalorder %s27, 0
      %p159 = por %p157, %p158
      %s161 = sadd.s32 %s160, 1
      %p164 = scmp.eq.s32.totalorder %s21, 1
      %p165 = scmp.ne.s32.totalorder %s160, %s162
      %p166 = scmp.eq.s32.totalorder %s21, 0
      %p167 = por %p165, %p166
      %p168 = scmp.ne.s32.totalorder %s160, %s162
      %p169 = scmp.eq.s32.totalorder %s26, 1
      %p170 = por %p168, %p169
      %p171 = scmp.ne.s32.totalorder %s162, %s163
      %p172 = scmp.eq.s32.totalorder %s26, 0
      %p173 = por %p171, %p172
      %p174 = scmp.ne.s32.totalorder %s162, %s163
      %p175 = scmp.eq.s32.totalorder %s27, 1
      %p176 = por %p174, %p175
      %p178 = scmp.ne.s32.totalorder %s163, %s177
      %p179 = scmp.eq.s32.totalorder %s27, 0
      %p180 = por %p178, %p179
      %s181 = ssub.s32 %s21, %s28
      %p182 = scmp.eq.s32.totalorder %s181, 0
      %s184 = sadd.s32 %s183, 1
      %s185 = scalar_select %p182, %s183, %s184
      %p188 = pneg %p182
      %p189 = scmp.eq.s32.totalorder %s21, 1
      %p190 = por %p188, %p189
      %p191 = scmp.ne.s32.totalorder %s183, %s186
      %p192 = scmp.eq.s32.totalorder %s21, 0
      %p193 = por %p191, %p192
      %p194 = scmp.ne.s32.totalorder %s183, %s186
      %p195 = scmp.eq.s32.totalorder %s26, 1
      %p196 = por %p194, %p195
      %p197 = scmp.ne.s32.totalorder %s186, %s187
      %p198 = scmp.eq.s32.totalorder %s26, 0
      %p199 = por %p197, %p198
      %p200 = scmp.ne.s32.totalorder %s186, %s187
      %p201 = scmp.eq.s32.totalorder %s27, 1
      %p202 = por %p200, %p201
      %p204 = scmp.ne.s32.totalorder %s187, %s203
      %p205 = scmp.eq.s32.totalorder %s27, 0
      %p206 = por %p204, %p205
      %p207 = scmp.le.s32.totalorder 1, %s21
      %p208 = scmp.lt.s32.totalorder %s21, 3
      %p209 = pnand %p207, %p208
      %p210 = pneg %p209
      // Predicated region
      $region9: #{tpu_custom_call.1} parent=5 // pred_check
        _
      $region10: #{tpu_custom_call.1} parent=5 // pred_check_branch
        %212 = sbr.rel (%p209) target = $region12
      $region11: #{tpu_custom_call.1} parent=5 // pred_region
        %s213 = ssub.s32 %s21, 1
        // Predicated region
        $region13: #{tpu_custom_call.1} parent=11 // pred_check
          %p214 = pneg %p68
        $region14: #{tpu_custom_call.1} parent=11 // pred_check_branch
          %216 = sbr.rel (%p214) target = $region16
        $region15: #{tpu_custom_call.1} parent=11 // pred_region
          %s218 = ssub.s32 2048, 2048
          %219 = vsyncadd [#allocation6], %s218
          %s220 = sshll.u32 [#allocation5], 4
          %s221 = int_to_ptr.vmem [resolvable:$true] %s220
          %226 = dma.hbm_to_vmem [thread:$0]  %s1, 2048, %s221, [#allocation6], 256, 256, 16
        $region16: #{tpu_custom_call.1} parent=11 // pred_fallthru
          _
        // Predicated region
        $region17: #{tpu_custom_call.1} parent=11 // pred_check
          %p227 = pneg %p89
        $region18: #{tpu_custom_call.1} parent=11 // pred_check_branch
          %229 = sbr.rel (%p227) target = $region20
        $region19: #{tpu_custom_call.1} parent=11 // pred_region
          _
        $region20: #{tpu_custom_call.1} parent=11 // pred_fallthru
          _
        // Predicated region
        $region21: #{tpu_custom_call.1} parent=11 // pred_check
          %p230 = pneg %p110
        $region22: #{tpu_custom_call.1} parent=11 // pred_check_branch
          %232 = sbr.rel (%p230) target = $region24
        $region23: #{tpu_custom_call.1} parent=11 // pred_region
          %s234 = ssub.s32 4096, 4096
          %235 = vsyncadd [#allocation6], %s234
          %s236 = sshll.u32 [#allocation7], 4
          %s237 = int_to_ptr.vmem [resolvable:$true] %s236
          %242 = dma.hbm_to_vmem [thread:$0]  %s3, 4096, %s237, [#allocation6], 128, 128, 8
        $region24: #{tpu_custom_call.1} parent=11 // pred_fallthru
          _
        // Predicated region
        $region25: #{tpu_custom_call.1} parent=11 // pred_check
          %p243 = pneg %p131
        $region26: #{tpu_custom_call.1} parent=11 // pred_check_branch
          %245 = sbr.rel (%p243) target = $region28
        $region27: #{tpu_custom_call.1} parent=11 // pred_region
          _
        $region28: #{tpu_custom_call.1} parent=11 // pred_fallthru
          _
        // Predicated region
        $region29: #{tpu_custom_call.1} parent=11 // pred_check
          %p246 = pneg %p152
        $region30: #{tpu_custom_call.1} parent=11 // pred_check_branch
          %248 = sbr.rel (%p246) target = $region32
        $region31: #{tpu_custom_call.1} parent=11 // pred_region
          %s250 = ssub.s32 2048, 2048
          %251 = vsyncadd [#allocation9], %s250
          %s252 = sshll.u32 [#allocation8], 4
          %s253 = int_to_ptr.vmem [resolvable:$true] %s252
          %258 = dma.hbm_to_vmem [thread:$0]  %s5, 2048, %s253, [#allocation9], 128, 128, 8
        $region32: #{tpu_custom_call.1} parent=11 // pred_fallthru
          _
        // Predicated region
        $region33: #{tpu_custom_call.1} parent=11 // pred_check
          %p259 = pneg %p173
        $region34: #{tpu_custom_call.1} parent=11 // pred_check_branch
          %261 = sbr.rel (%p259) target = $region36
        $region35: #{tpu_custom_call.1} parent=11 // pred_region
          _
        $region36: #{tpu_custom_call.1} parent=11 // pred_fallthru
          _
      $region12: #{tpu_custom_call.1} parent=5 // pred_fallthru
        _
      %p262 = scmp.lt.s32.totalorder %s21, 2
      // Predicated region
      $region37: #{tpu_custom_call.1} parent=5 // pred_check
        %p263 = pneg %p262
      $region38: #{tpu_custom_call.1} parent=5 // pred_check_branch
        %265 = sbr.rel (%p263) target = $region40
      $region39: #{tpu_custom_call.1} parent=5 // pred_region
        // Predicated region
        $region41: #{tpu_custom_call.1} parent=39 // pred_check
          %p266 = pneg %p41
        $region42: #{tpu_custom_call.1} parent=39 // pred_check_branch
          %268 = sbr.rel (%p266) target = $region44
        $region43: #{tpu_custom_call.1} parent=39 // pred_region
          %s269 = sand.u32 %s31, 1
          %s270 = scalar_lea.sflag [#allocation3], %s269
          %s271 = sand.u32 %s31, 1
          %s272 = smul.addr %s271, 8
          %s273 = scalar_lea.vmem [#allocation2], %s272
          %s275 = ssub.s32 128, 128
          %276 = vsyncadd %s270, %s275
          %s277 = smul.addr %s21, 128
          %s278 = scalar_lea.hbm %s0, %s277
          %s280 = sshll.u32 %s273, 4
          %s281 = int_to_ptr.vmem [resolvable:$true] %s280
          %283 = dma.hbm_to_vmem [thread:$0]  %s278, 128, %s281, %s270
        $region44: #{tpu_custom_call.1} parent=39 // pred_fallthru
          _
      $region40: #{tpu_custom_call.1} parent=5 // pred_fallthru
        _
      %p284 = scmp.le.s32.totalorder 1, %s21
      %p285 = scmp.lt.s32.totalorder %s21, 3
      %p286 = pnand %p284, %p285
      %p287 = pneg %p286
      // Predicated region
      $region45: #{tpu_custom_call.1} parent=5 // pred_check
        _
      $region46: #{tpu_custom_call.1} parent=5 // pred_check_branch
        %289 = sbr.rel (%p286) target = $region48
      $region47: #{tpu_custom_call.1} parent=5 // pred_region
        %s290 = ssub.s32 %s21, 1
        %s291 = sand.u32 %s34, 1
        %s292 = scalar_lea.sflag [#allocation3], %s291
        %s293 = sand.u32 %s34, 1
        %s294 = smul.addr %s293, 8
        %s295 = scalar_lea.vmem [#allocation2], %s294
        // Predicated region
        $region49: #{tpu_custom_call.1} parent=47 // pred_check
          %p296 = pneg %p47
        $region50: #{tpu_custom_call.1} parent=47 // pred_check_branch
          %298 = sbr.rel (%p296) target = $region52
        $region51: #{tpu_custom_call.1} parent=47 // pred_region
          %299 = dma.done %s292, 128
        $region52: #{tpu_custom_call.1} parent=47 // pred_fallthru
          _
        // Predicated region
        $region53: #{tpu_custom_call.1} parent=47 // pred_check
          %p300 = pneg %p68
        $region54: #{tpu_custom_call.1} parent=47 // pred_check_branch
          %302 = sbr.rel (%p300) target = $region56
        $region55: #{tpu_custom_call.1} parent=47 // pred_region
          %303 = dma.done [#allocation6], 2048
        $region56: #{tpu_custom_call.1} parent=47 // pred_fallthru
          _
        // Predicated region
        $region57: #{tpu_custom_call.1} parent=47 // pred_check
          %p304 = pneg %p110
        $region58: #{tpu_custom_call.1} parent=47 // pred_check_branch
          %306 = sbr.rel (%p304) target = $region60
        $region59: #{tpu_custom_call.1} parent=47 // pred_region
          %307 = dma.done [#allocation6], 4096
        $region60: #{tpu_custom_call.1} parent=47 // pred_fallthru
          _
        // Predicated region
        $region61: #{tpu_custom_call.1} parent=47 // pred_check
          %p308 = pneg %p152
        $region62: #{tpu_custom_call.1} parent=47 // pred_check_branch
          %310 = sbr.rel (%p308) target = $region64
        $region63: #{tpu_custom_call.1} parent=47 // pred_region
          %311 = dma.done [#allocation9], 2048
        $region64: #{tpu_custom_call.1} parent=47 // pred_fallthru
          _
        %s312 = sand.u32 %s34, 1
        %s313 = scalar_lea.sflag [#allocation3], %s312
        %s314 = sand.u32 %s34, 1
        %s315 = smul.addr %s314, 8
        %s316 = scalar_lea.vmem [#allocation2], %s315
        %p317 = pneg %p47
        %p318 = pneg %p44
        %p319 = pneg %p68
        %p320 = pneg %p65
        %p321 = pneg %p89
        %p322 = pneg %p86
        %p323 = pneg %p110
        %p324 = pneg %p107
        %p325 = pneg %p131
        %p326 = pneg %p128
        %p327 = pneg %p152
        %p328 = pneg %p149
        %p329 = pneg %p173
        %p330 = pneg %p170
        %p331 = pneg %p199
        %p332 = pneg %p196
        %s333 = sand.u32 %s186, 1
        %s334 = scalar_lea.sflag [#allocation4], %s333
        %s335 = sand.u32 %s186, 1
        %s336 = smul.addr %s335, 8
        %s337 = scalar_lea.vmem [#allocation10], %s336
        %v338 = vld [vmem:[%s295] sm:$0xff]
        %v339 = vld [vmem:[#allocation5] sm:$0xff]
        %v340 = vld [vmem:[#allocation5 + $0x8] sm:$0xff]
        %v341 = vld [vmem:[#allocation5 + $0x10] sm:$0xff]
        %v342 = vld [vmem:[#allocation5 + $0x18] sm:$0xff]
        %v343 = vld [vmem:[#allocation5 + $0x20] sm:$0xff]
        %v344 = vld [vmem:[#allocation5 + $0x28] sm:$0xff]
        %v345 = vld [vmem:[#allocation5 + $0x30] sm:$0xff]
        %v346 = vld [vmem:[#allocation5 + $0x38] sm:$0xff]
        %v347 = vld [vmem:[#allocation5 + $0x40] sm:$0xff]
        %v348 = vld [vmem:[#allocation5 + $0x48] sm:$0xff]
        %v349 = vld [vmem:[#allocation5 + $0x50] sm:$0xff]
        %v350 = vld [vmem:[#allocation5 + $0x58] sm:$0xff]
        %v351 = vld [vmem:[#allocation5 + $0x60] sm:$0xff]
        %v352 = vld [vmem:[#allocation5 + $0x68] sm:$0xff]
        %v353 = vld [vmem:[#allocation5 + $0x70] sm:$0xff]
        %v354 = vld [vmem:[#allocation5 + $0x78] sm:$0xff]
        %v355 = vld [vmem:[%s2] sm:$0x3]
        %v357 = vlaneseq
        %v358 = vshrl.u32 %v357, 7
        %v359 = vsub.s32 0, %v358
        %v360 = vrot.slane %v355, %v359
        %v361 = vlaneseq
        %v362 = vshrl.u32 %v361, 7
        %v363 = vsub.s32 1, %v362
        %v364 = vrot.slane %v355, %v363
        %vm367 = vcmask 523264
        %v369 = vsel %vm367, %v338, 0
        %371 = vmatprep.subr.mxu0 %v340
        %372 = vmatpush1.msra.mxu0 %v339
        %373 = vmatprep.subr.mxu0 %v342
        %374 = vmatpush1.msra.mxu0 %v341
        %375 = vmatprep.subr.mxu0 %v344
        %376 = vmatpush1.msra.mxu0 %v343
        %377 = vmatprep.subr.mxu0 %v346
        %378 = vmatpush1.msra.mxu0 %v345
        %379 = vmatprep.subr.mxu0 %v348
        %380 = vmatpush1.msra.mxu0 %v347
        %381 = vmatprep.subr.mxu0 %v350
        %382 = vmatpush1.msra.mxu0 %v349
        %383 = vmatprep.subr.mxu0 %v352
        %384 = vmatpush1.msra.mxu0 %v351
        %385 = vmatprep.subr.mxu0 %v354
        %386 = vmatpush1.msra.mxu0 %v353
        %387 = vmatprep.subr.mxu0 0.0
        %388 = vmatpush1.msra.mxu0 0.0
        %389 = vmatprep.subr.mxu0 0.0
        %390 = vmatpush1.msra.mxu0 0.0
        %391 = vmatprep.subr.mxu0 0.0
        %392 = vmatpush1.msra.mxu0 0.0
        %393 = vmatprep.subr.mxu0 0.0
        %394 = vmatpush1.msra.mxu0 0.0
        %395 = vmatprep.subr.mxu0 0.0
        %396 = vmatpush1.msra.mxu0 0.0
        %397 = vmatprep.subr.mxu0 0.0
        %398 = vmatpush1.msra.mxu0 0.0
        %399 = vmatprep.subr.mxu0 0.0
        %400 = vmatpush1.msra.mxu0 0.0
        %401 = vmatprep.subr.mxu0 0.0
        %402 = vmatpush1.msra.mxu0 0.0
        %403 = vmatprep.subr.mxu0 0.0
        %404 = vmatpush1.msra.mxu0 0.0
        %405 = vmatprep.subr.mxu0 0.0
        %406 = vmatpush1.msra.mxu0 0.0
        %407 = vmatprep.subr.mxu0 0.0
        %408 = vmatpush1.msra.mxu0 0.0
        %409 = vmatprep.subr.mxu0 0.0
        %410 = vmatpush1.msra.mxu0 0.0
        %411 = vmatprep.subr.mxu0 0.0
        %412 = vmatpush1.msra.mxu0 0.0
        %413 = vmatprep.subr.mxu0 0.0
        %414 = vmatpush1.msra.mxu0 0.0
        %415 = vmatprep.subr.mxu0 0.0
        %416 = vmatpush1.msra.mxu0 0.0
        %417 = vmatprep.subr.mxu0 0.0
        %418 = vmatpush1.msra.mxu0 0.0
        %419 = vmatprep.subr.mxu0 0.0
        %420 = vmatpush1.msra.mxu0 0.0
        %421 = vmatprep.subr.mxu0 0.0
        %422 = vmatpush1.msra.mxu0 0.0
        %423 = vmatprep.subr.mxu0 0.0
        %424 = vmatpush1.msra.mxu0 0.0
        %425 = vmatprep.subr.mxu0 0.0
        %426 = vmatpush1.msra.mxu0 0.0
        %427 = vmatprep.subr.mxu0 0.0
        %428 = vmatpush1.msra.mxu0 0.0
        %429 = vmatprep.subr.mxu0 0.0
        %430 = vmatpush1.msra.mxu0 0.0
        %431 = vmatprep.subr.mxu0 0.0
        %432 = vmatpush1.msra.mxu0 0.0
        %433 = vmatprep.subr.mxu0 0.0
        %434 = vmatpush1.msra.mxu0 0.0
        %435 = vmatprep.mubr.f32.mxu0 0.0
        %436 = vmatmul.mubr.f32.gmra.mrb[0].mxu0 %v369
        %v437 = vpop.f32.mrb[0].mxu0
        %v438 = vadd.f32 %v360, %v437
        %v439 = vpop.f32.mrb[0].mxu0
        %v440 = vadd.f32 %v364, %v439
        %441 = vdwg.mxu0
        %v442 = vmax.f32 %v438, 0.0
        %v443 = vmax.f32 %v440, 0.0
        %v444 = vld [vmem:[#allocation7] sm:$0xff]
        %v445 = vld [vmem:[#allocation7 + $0x8] sm:$0xff]
        %v446 = vld [vmem:[#allocation7 + $0x10] sm:$0xff]
        %v447 = vld [vmem:[#allocation7 + $0x18] sm:$0xff]
        %v448 = vld [vmem:[#allocation7 + $0x20] sm:$0xff]
        %v449 = vld [vmem:[#allocation7 + $0x28] sm:$0xff]
        %v450 = vld [vmem:[#allocation7 + $0x30] sm:$0xff]
        %v451 = vld [vmem:[#allocation7 + $0x38] sm:$0xff]
        %v452 = vld [vmem:[#allocation7 + $0x40] sm:$0xff]
        %v453 = vld [vmem:[#allocation7 + $0x48] sm:$0xff]
        %v454 = vld [vmem:[#allocation7 + $0x50] sm:$0xff]
        %v455 = vld [vmem:[#allocation7 + $0x58] sm:$0xff]
        %v456 = vld [vmem:[#allocation7 + $0x60] sm:$0xff]
        %v457 = vld [vmem:[#allocation7 + $0x68] sm:$0xff]
        %v458 = vld [vmem:[#allocation7 + $0x70] sm:$0xff]
        %v459 = vld [vmem:[#allocation7 + $0x78] sm:$0xff]
        %v460 = vld [vmem:[#allocation7 + $0x80] sm:$0xff]
        %v461 = vld [vmem:[#allocation7 + $0x88] sm:$0xff]
        %v462 = vld [vmem:[#allocation7 + $0x90] sm:$0xff]
        %v463 = vld [vmem:[#allocation7 + $0x98] sm:$0xff]
        %v464 = vld [vmem:[#allocation7 + $0xa0] sm:$0xff]
        %v465 = vld [vmem:[#allocation7 + $0xa8] sm:$0xff]
        %v466 = vld [vmem:[#allocation7 + $0xb0] sm:$0xff]
        %v467 = vld [vmem:[#allocation7 + $0xb8] sm:$0xff]
        %v468 = vld [vmem:[#allocation7 + $0xc0] sm:$0xff]
        %v469 = vld [vmem:[#allocation7 + $0xc8] sm:$0xff]
        %v470 = vld [vmem:[#allocation7 + $0xd0] sm:$0xff]
        %v471 = vld [vmem:[#allocation7 + $0xd8] sm:$0xff]
        %v472 = vld [vmem:[#allocation7 + $0xe0] sm:$0xff]
        %v473 = vld [vmem:[#allocation7 + $0xe8] sm:$0xff]
        %v474 = vld [vmem:[#allocation7 + $0xf0] sm:$0xff]
        %v475 = vld [vmem:[#allocation7 + $0xf8] sm:$0xff]
        %v476 = vld [vmem:[%s4] sm:$0x1]
        %v478 = vlaneseq
        %v479 = vshrl.u32 %v478, 7
        %v480 = vsub.s32 0, %v479
        %v481 = vrot.slane %v476, %v480
        %483 = vmatprep.subr.mxu0 0.0
        %484 = vmatpush1.msra.mxu0 %v444
        %485 = vmatprep.subr.mxu0 0.0
        %486 = vmatpush1.msra.mxu0 %v445
        %487 = vmatprep.subr.mxu0 0.0
        %488 = vmatpush1.msra.mxu0 %v446
        %489 = vmatprep.subr.mxu0 0.0
        %490 = vmatpush1.msra.mxu0 %v447
        %491 = vmatprep.subr.mxu0 0.0
        %492 = vmatpush1.msra.mxu0 %v448
        %493 = vmatprep.subr.mxu0 0.0
        %494 = vmatpush1.msra.mxu0 %v449
        %495 = vmatprep.subr.mxu0 0.0
        %496 = vmatpush1.msra.mxu0 %v450
        %497 = vmatprep.subr.mxu0 0.0
        %498 = vmatpush1.msra.mxu0 %v451
        %499 = vmatprep.subr.mxu0 0.0
        %500 = vmatpush1.msra.mxu0 %v452
        %501 = vmatprep.subr.mxu0 0.0
        %502 = vmatpush1.msra.mxu0 %v453
        %503 = vmatprep.subr.mxu0 0.0
        %504 = vmatpush1.msra.mxu0 %v454
        %505 = vmatprep.subr.mxu0 0.0
        %506 = vmatpush1.msra.mxu0 %v455
        %507 = vmatprep.subr.mxu0 0.0
        %508 = vmatpush1.msra.mxu0 %v456
        %509 = vmatprep.subr.mxu0 0.0
        %510 = vmatpush1.msra.mxu0 %v457
        %511 = vmatprep.subr.mxu0 0.0
        %512 = vmatpush1.msra.mxu0 %v458
        %513 = vmatprep.subr.mxu0 0.0
        %514 = vmatpush1.msra.mxu0 %v459
        %515 = vmatprep.subr.mxu0 0.0
        %516 = vmatpush1.msra.mxu0 %v460
        %517 = vmatprep.subr.mxu0 0.0
        %518 = vmatpush1.msra.mxu0 %v461
        %519 = vmatprep.subr.mxu0 0.0
        %520 = vmatpush1.msra.mxu0 %v462
        %521 = vmatprep.subr.mxu0 0.0
        %522 = vmatpush1.msra.mxu0 %v463
        %523 = vmatprep.subr.mxu0 0.0
        %524 = vmatpush1.msra.mxu0 %v464
        %525 = vmatprep.subr.mxu0 0.0
        %526 = vmatpush1.msra.mxu0 %v465
        %527 = vmatprep.subr.mxu0 0.0
        %528 = vmatpush1.msra.mxu0 %v466
        %529 = vmatprep.subr.mxu0 0.0
        %530 = vmatpush1.msra.mxu0 %v467
        %531 = vmatprep.subr.mxu0 0.0
        %532 = vmatpush1.msra.mxu0 %v468
        %533 = vmatprep.subr.mxu0 0.0
        %534 = vmatpush1.msra.mxu0 %v469
        %535 = vmatprep.subr.mxu0 0.0
        %536 = vmatpush1.msra.mxu0 %v470
        %537 = vmatprep.subr.mxu0 0.0
        %538 = vmatpush1.msra.mxu0 %v471
        %539 = vmatprep.subr.mxu0 0.0
        %540 = vmatpush1.msra.mxu0 %v472
        %541 = vmatprep.subr.mxu0 0.0
        %542 = vmatpush1.msra.mxu0 %v473
        %543 = vmatprep.subr.mxu0 0.0
        %544 = vmatpush1.msra.mxu0 %v474
        %545 = vmatprep.subr.mxu0 0.0
        %546 = vmatpush1.msra.mxu0 %v475
        %547 = vmatprep.mubr.f32.mxu0 %v443
        %548 = vmatmul.mubr.f32.gmra.mrb[0].mxu0 %v442
        %v549 = vpop.f32.mrb[0].mxu0
        %v550 = vadd.f32 %v481, %v549
        %v551 = vpop.f32.mrb[0].mxu0
        %552 = vdwg.mxu0
        %v553 = vmax.f32 %v550, 0.0
        %v554 = vld [vmem:[#allocation8] sm:$0xff]
        %v555 = vld [vmem:[#allocation8 + $0x8] sm:$0xff]
        %v556 = vld [vmem:[#allocation8 + $0x10] sm:$0xff]
        %v557 = vld [vmem:[#allocation8 + $0x18] sm:$0xff]
        %v558 = vld [vmem:[#allocation8 + $0x20] sm:$0xff]
        %v559 = vld [vmem:[#allocation8 + $0x28] sm:$0xff]
        %v560 = vld [vmem:[#allocation8 + $0x30] sm:$0xff]
        %v561 = vld [vmem:[#allocation8 + $0x38] sm:$0xff]
        %v562 = vld [vmem:[#allocation8 + $0x40] sm:$0xff]
        %v563 = vld [vmem:[#allocation8 + $0x48] sm:$0xff]
        %v564 = vld [vmem:[#allocation8 + $0x50] sm:$0xff]
        %v565 = vld [vmem:[#allocation8 + $0x58] sm:$0xff]
        %v566 = vld [vmem:[#allocation8 + $0x60] sm:$0xff]
        %v567 = vld [vmem:[#allocation8 + $0x68] sm:$0xff]
        %v568 = vld [vmem:[#allocation8 + $0x70] sm:$0xff]
        %v569 = vld [vmem:[#allocation8 + $0x78] sm:$0xff]
        %v570 = vld [vmem:[%s6] sm:$0x1]
        %v572 = vlaneseq
        %v573 = vshrl.u32 %v572, 7
        %v574 = vsub.s32 0, %v573
        %v575 = vrot.slane %v570, %v574
        %577 = vmatprep.subr.mxu0 0.0
        %578 = vmatpush1.msra.mxu0 %v554
        %579 = vmatprep.subr.mxu0 0.0
        %580 = vmatpush1.msra.mxu0 %v555
        %581 = vmatprep.subr.mxu0 0.0
        %582 = vmatpush1.msra.mxu0 %v556
        %583 = vmatprep.subr.mxu0 0.0
        %584 = vmatpush1.msra.mxu0 %v557
        %585 = vmatprep.subr.mxu0 0.0
        %586 = vmatpush1.msra.mxu0 %v558
        %587 = vmatprep.subr.mxu0 0.0
        %588 = vmatpush1.msra.mxu0 %v559
        %589 = vmatprep.subr.mxu0 0.0
        %590 = vmatpush1.msra.mxu0 %v560
        %591 = vmatprep.subr.mxu0 0.0
        %592 = vmatpush1.msra.mxu0 %v561
        %593 = vmatprep.subr.mxu0 0.0
        %594 = vmatpush1.msra.mxu0 %v562
        %595 = vmatprep.subr.mxu0 0.0
        %596 = vmatpush1.msra.mxu0 %v563
        %597 = vmatprep.subr.mxu0 0.0
        %598 = vmatpush1.msra.mxu0 %v564
        %599 = vmatprep.subr.mxu0 0.0
        %600 = vmatpush1.msra.mxu0 %v565
        %601 = vmatprep.subr.mxu0 0.0
        %602 = vmatpush1.msra.mxu0 %v566
        %603 = vmatprep.subr.mxu0 0.0
        %604 = vmatpush1.msra.mxu0 %v567
        %605 = vmatprep.subr.mxu0 0.0
        %606 = vmatpush1.msra.mxu0 %v568
        %607 = vmatprep.subr.mxu0 0.0
        %608 = vmatpush1.msra.mxu0 %v569
        %609 = vmatprep.subr.mxu0 0.0
        %610 = vmatpush1.msra.mxu0 0.0
        %611 = vmatprep.subr.mxu0 0.0
        %612 = vmatpush1.msra.mxu0 0.0
        %613 = vmatprep.subr.mxu0 0.0
        %614 = vmatpush1.msra.mxu0 0.0
        %615 = vmatprep.subr.mxu0 0.0
        %616 = vmatpush1.msra.mxu0 0.0
        %617 = vmatprep.subr.mxu0 0.0
        %618 = vmatpush1.msra.mxu0 0.0
        %619 = vmatprep.subr.mxu0 0.0
        %620 = vmatpush1.msra.mxu0 0.0
        %621 = vmatprep.subr.mxu0 0.0
        %622 = vmatpush1.msra.mxu0 0.0
        %623 = vmatprep.subr.mxu0 0.0
        %624 = vmatpush1.msra.mxu0 0.0
        %625 = vmatprep.subr.mxu0 0.0
        %626 = vmatpush1.msra.mxu0 0.0
        %627 = vmatprep.subr.mxu0 0.0
        %628 = vmatpush1.msra.mxu0 0.0
        %629 = vmatprep.subr.mxu0 0.0
        %630 = vmatpush1.msra.mxu0 0.0
        %631 = vmatprep.subr.mxu0 0.0
        %632 = vmatpush1.msra.mxu0 0.0
        %633 = vmatprep.subr.mxu0 0.0
        %634 = vmatpush1.msra.mxu0 0.0
        %635 = vmatprep.subr.mxu0 0.0
        %636 = vmatpush1.msra.mxu0 0.0
        %637 = vmatprep.subr.mxu0 0.0
        %638 = vmatpush1.msra.mxu0 0.0
        %639 = vmatprep.subr.mxu0 0.0
        %640 = vmatpush1.msra.mxu0 0.0
        %641 = vmatprep.mubr.f32.mxu0 0.0
        %642 = vmatmul.mubr.f32.gmra.mrb[0].mxu0 %v553
        %v643 = vpop.f32.mrb[0].mxu0
        %v644 = vadd.f32 %v575, %v643
        %v645 = vpop.f32.mrb[0].mxu0
        %646 = vdwg.mxu0
        %647 = vmax.xlane.f32.xlu0 %v644
        %v648 = vpop.xlane.xlu0 %647
        %v649 = vsub.f32 %v644, %v648
        %v650 = vmul.f32 %v649, 1.442695
        %v651 = vpow.pop %v650
        %652 = vadd.xlane.f32.xlu0 %v651
        %v653 = vpop.xlane.xlu0 %652
        %v654 = vrcp.pop %v653
        %v655 = vmul.f32 %v651, %v654
        %656 = vst [vmem:[%s337] sm:$0xff] %v655
        %s657 = sand.u32 %s186, 1
        %s658 = scalar_lea.sflag [#allocation4], %s657
        %s659 = sand.u32 %s186, 1
        %s660 = smul.addr %s659, 8
        %s661 = scalar_lea.vmem [#allocation10], %s660
        // Predicated region
        $region65: #{tpu_custom_call.1} parent=47 // pred_check
          %p662 = pneg %p196
        $region66: #{tpu_custom_call.1} parent=47 // pred_check_branch
          %664 = sbr.rel (%p662) target = $region68
        $region67: #{tpu_custom_call.1} parent=47 // pred_region
          %s666 = ssub.s32 128, 128
          %667 = vsyncadd %s658, %s666
          %s668 = smul.addr %s26, 128
          %s669 = scalar_lea.hbm %s7, %s668
          %s671 = sshll.u32 %s661, 4
          %s672 = int_to_ptr.vmem [resolvable:$true] %s671
          %674 = dma.vmem_to_hbm [thread:$0]  %s672, 128, %s669, %s658
        $region68: #{tpu_custom_call.1} parent=47 // pred_fallthru
          _
      $region48: #{tpu_custom_call.1} parent=5 // pred_fallthru
        _
      %p675 = scmp.le.s32.totalorder 2, %s21
      // Predicated region
      $region69: #{tpu_custom_call.1} parent=5 // pred_check
        %p676 = pneg %p675
      $region70: #{tpu_custom_call.1} parent=5 // pred_check_branch
        %678 = sbr.rel (%p676) target = $region72
      $region71: #{tpu_custom_call.1} parent=5 // pred_region
        %s679 = ssub.s32 %s21, 2
        // Predicated region
        $region73: #{tpu_custom_call.1} parent=71 // pred_check
          %p680 = pneg %p202
        $region74: #{tpu_custom_call.1} parent=71 // pred_check_branch
          %682 = sbr.rel (%p680) target = $region76
        $region75: #{tpu_custom_call.1} parent=71 // pred_region
          %s683 = sand.u32 %s187, 1
          %s684 = scalar_lea.sflag [#allocation4], %s683
          %s685 = sand.u32 %s187, 1
          %s686 = smul.addr %s685, 8
          %s687 = scalar_lea.vmem [#allocation10], %s686
          %688 = dma.done %s684, 128
        $region76: #{tpu_custom_call.1} parent=71 // pred_fallthru
          _
      $region72: #{tpu_custom_call.1} parent=5 // pred_fallthru
        _
    $region6: #{tpu_custom_call.1} parent=1 // loop_footer
      %s25 = sadd.s32 1, %s21
    $region7: #{tpu_custom_call.1} parent=1 // loop_footer_branch
      %20 = sbr.rel target = $region3
    $region8: #{tpu_custom_call.1} parent=1 // loop_exit
      _
    %689 = vsyncpa [#allocation3], 1
    %s690 = scalar_lea.sflag [#allocation3], 1
    %691 = vsyncpa %s690, 1
    %692 = vsyncpa [#allocation6], 1
    %693 = vsyncpa [#allocation9], 1
    %694 = vsyncpa [#allocation4], 1
    %s695 = scalar_lea.sflag [#allocation4], 1
    %696 = vsyncpa %s695, 1

</llo_original>
